<compile_context>
chip_gen: v6e
topology: v6e:2x2x1
jax: 0.10.0
libtpu: 0.0.40
codegen_flags: <defaults>
</compile_context>

<pallas_src>
import jax
import jax.numpy as jnp
from jax.experimental import pallas as pl
from jax.experimental.pallas import tpu as pltpu

NUM_CLASSES = 2
NUM_BOX = 4 * NUM_CLASSES                      # bbox_pred out_features
REPRESENTATION_SIZE = 1024                     # box_predictor.cls_score.in_features
ROI_CHANNELS = 256                             # FPN feature channels
ROI_POOL = 7                                   # MultiScaleRoIAlign output resolution
ROI_FEAT = ROI_CHANNELS * ROI_POOL * ROI_POOL  # 12544 = 98 * 128
HEAD_PAD = 128                                 # lane-dense padded predictor width
SCORE_OFF = NUM_CLASSES + NUM_BOX              # = 10; scores live in lanes [10:12]
# slab layout: [0:2]=class logits, [2:10]=box deltas, [10:12]=softmax scores, rest 0


def _round_up(x, m):
    return ((x + m - 1) // m) * m


# ------------------------------------------------------------------------
# Kernel 1: per-channel image normalization (GeneralizedRCNNTransform.normalize)
# ------------------------------------------------------------------------
def _normalize_kernel(x_ref, mean_ref, istd_ref, o_ref):
    o_ref[...] = ((x_ref[...] - mean_ref[...]) * istd_ref[...]).astype(o_ref.dtype)


def _pick_spatial_tile(rows, hw, itemsize, max_block_bytes):
    # Largest multiple of 128 lanes that keeps a block under max_block_bytes.
    # If the whole row fits the budget, take it in one full-width block
    # (block dim == array dim is always legal).  Otherwise return a 128-multiple
    # tile; the remainder block is masked by Pallas (grid uses cdiv).
    max_lanes = max(128, (max_block_bytes // (rows * itemsize) // 128) * 128)
    if max_lanes >= hw:
        return hw
    return max_lanes


def normalize_images(images, mean, std, *, max_block_bytes=4 << 20, out_dtype=None):
    # TODO(synk): emit bf16 here (out_dtype=jnp.bfloat16) once the backbone
    # consumes bf16; halves the writeback of this HBM-bound kernel.
    n, c, h, w = images.shape
    hw = h * w
    out_dtype = images.dtype if out_dtype is None else out_dtype
    x2d = images.reshape(n * c, hw)
    # Per-row (image*channel) constants; constant block index => fetched once.
    mean_col = jnp.tile(mean.reshape(c, 1), (n, 1)).astype(images.dtype)
    istd_col = jnp.tile((1.0 / std).reshape(c, 1), (n, 1)).astype(images.dtype)
    t = _pick_spatial_tile(n * c, hw, images.dtype.itemsize, max_block_bytes)
    out = pl.pallas_call(
        _normalize_kernel,
        out_shape=jax.ShapeDtypeStruct((n * c, hw), out_dtype),
        grid_spec=pltpu.PrefetchScalarGridSpec(
            num_scalar_prefetch=0,
            grid=(pl.cdiv(hw, t),),
            in_specs=[
                pl.BlockSpec((n * c, t), lambda i: (0, i)),
                pl.BlockSpec((n * c, 1), lambda i: (0, 0)),
                pl.BlockSpec((n * c, 1), lambda i: (0, 0)),
            ],
            out_specs=pl.BlockSpec((n * c, t), lambda i: (0, i)),
        ),
        compiler_params=pltpu.CompilerParams(
            dimension_semantics=("parallel",)),
    )(x2d, mean_col, istd_col)
    return out.reshape(n, c, h, w)


# ------------------------------------------------------------------------
# Kernel 2: RoI box head fc (flatten -> 1024 + ReLU) fused with the
# FastRCNNPredictor (single 128-wide padded head matmul) and class softmax.
# (rows, K)-tiled matmul, int8 weight stream + bf16 activations, f32 VMEM acc.
# ------------------------------------------------------------------------
def _box_head_predictor_kernel(x_ref, w_ref, scale_ref, fcb_ref, hw_ref, hb_ref,
                               slab_ref, acc_ref):
    k = pl.program_id(1)

    @pl.when(k == 0)
    def _():
        acc_ref[...] = jnp.zeros_like(acc_ref)

    # int8 weight tile -> bf16 on the VPU (hidden under the weight DMA),
    # bf16 x bf16 -> f32 accumulation on the MXU.
    acc_ref[...] += jnp.dot(x_ref[...], w_ref[...].astype(jnp.bfloat16),
                            preferred_element_type=jnp.float32)

    @pl.when(k == pl.num_programs(1) - 1)
    def _():
        # Fold the per-column int8 dequant scale + fc bias + ReLU back into the
        # resident accumulator (no fresh (tm, 1024) f32 temp).
        acc_ref[...] = jnp.maximum(
            acc_ref[...] * scale_ref[...] + fcb_ref[...], 0.0)
        # Single 128-wide zero-padded head matmul; lanes [0:2]=logits,
        # [2:10]=deltas, [10:12]=logits copy (softmax overwrites them), rest 0.
        head = jnp.dot(acc_ref[...], hw_ref[...],
                       preferred_element_type=jnp.float32) + hb_ref[...]
        lane = jax.lax.broadcasted_iota(jnp.int32, head.shape, 1)
        smask = (lane >= SCORE_OFF) & (lane < SCORE_OFF + NUM_CLASSES)
        m = jnp.max(jnp.where(smask, head, -1e30), axis=-1, keepdims=True)
        e = jnp.where(smask, jnp.exp(head - m), 0.0)
        inv = pl.reciprocal(jnp.sum(e, axis=-1, keepdims=True), approx=True)
        slab_ref[...] = jnp.where(smask, e * inv, head).astype(slab_ref.dtype)


def box_head_and_predictor(roi_flat_bf16, fcw_q, fcw_scale, fc_b, head_w, head_b,
                           *, tk=1792, tile_m=256):
    r, kdim = roi_flat_bf16.shape
    hdim = fcw_q.shape[1]
    assert kdim % tk == 0 and tk % 128 == 0
    # bf16 sublane tile is 16: clamp tile_m to the padded row count and pad rows.
    tm = min(tile_m, _round_up(r, 16))
    r_pad = _round_up(r, tm)
    if r_pad != r:
        roi_flat_bf16 = jnp.pad(roi_flat_bf16, ((0, r_pad - r), (0, 0)))
    slab = pl.pallas_call(
        _box_head_predictor_kernel,
        out_shape=jax.ShapeDtypeStruct((r_pad, HEAD_PAD), jnp.float32),
        grid_spec=pltpu.PrefetchScalarGridSpec(
            num_scalar_prefetch=0,
            grid=(r_pad // tm, kdim // tk),
            in_specs=[
                pl.BlockSpec((tm, tk), lambda m, k: (m, k)),          # bf16 acts
                pl.BlockSpec((tk, hdim), lambda m, k: (k, 0)),        # int8 fc W
                pl.BlockSpec((1, hdim), lambda m, k: (0, 0)),         # dequant scale
                pl.BlockSpec((1, hdim), lambda m, k: (0, 0)),         # f32 fc bias
                pl.BlockSpec((hdim, HEAD_PAD), lambda m, k: (0, 0)),  # padded head W
                pl.BlockSpec((1, HEAD_PAD), lambda m, k: (0, 0)),     # padded head b
            ],
            out_specs=pl.BlockSpec((tm, HEAD_PAD), lambda m, k: (m, 0)),
            scratch_shapes=[pltpu.VMEM((tm, hdim), jnp.float32)],
        ),
        compiler_params=pltpu.CompilerParams(
            dimension_semantics=("parallel", "arbitrary")),
    )(roi_flat_bf16, fcw_q, fcw_scale, fc_b, head_w, head_b)
    return slab[:r]


def _quantize_per_column(w):
    """Per-output-column symmetric int8 quantization of the fc weight."""
    amax = jnp.max(jnp.abs(w), axis=0, keepdims=True)
    scale = (jnp.maximum(amax, 1e-8) / 127.0).astype(jnp.float32)
    w_q = jnp.clip(jnp.round(w / scale), -127, 127).astype(jnp.int8)
    return w_q, scale


def _pack_predictor_params(cls_w, cls_b, bbox_w, bbox_b):
    """cls/bbox weights -> one zero-padded (hdim, 128) matrix.

    cls_w/cls_b are written twice: lanes [0:2] stay as raw logits, lanes
    [10:12] hold a logits copy that the in-kernel softmax overwrites with
    scores (no sub-128-lane concatenates in the epilogue).
    """
    hdim, nc = cls_w.shape
    nb = bbox_w.shape[1]
    w = jnp.zeros((hdim, HEAD_PAD), jnp.float32)
    w = w.at[:, :nc].set(cls_w.astype(jnp.float32))
    w = w.at[:, nc:nc + nb].set(bbox_w.astype(jnp.float32))
    w = w.at[:, SCORE_OFF:SCORE_OFF + nc].set(cls_w.astype(jnp.float32))
    b = jnp.zeros((1, HEAD_PAD), jnp.float32)
    b = b.at[0, :nc].set(cls_b.reshape(-1).astype(jnp.float32))
    b = b.at[0, nc:nc + nb].set(bbox_b.reshape(-1).astype(jnp.float32))
    b = b.at[0, SCORE_OFF:SCORE_OFF + nc].set(cls_b.reshape(-1).astype(jnp.float32))
    return w, b


# ------------------------------------------------------------------------
# Forward pass glue (plain JAX)
# ------------------------------------------------------------------------
def faster_rcnn_forward(images, roi_features, params):
    normalized = normalize_images(images, params["image_mean"], params["image_std"])
    # TODO(synk): ResNet50-FPN backbone, RPN anchor/proposal generation, RoIAlign
    # and NMS/box decoding are data-dependent gather/sort pipelines with no clean
    # single-kernel Pallas equivalent; `roi_features` stands in for the pooled
    # RoIAlign output feeding the box head.
    roi_flat = roi_features.reshape(roi_features.shape[0], -1).astype(jnp.bfloat16)
    fcw_q, fcw_scale = _quantize_per_column(params["fc_w"])
    head_w, head_b = _pack_predictor_params(
        params["cls_w"], params["cls_b"], params["bbox_w"], params["bbox_b"])
    slab = box_head_and_predictor(
        roi_flat, fcw_q, fcw_scale,
        params["fc_b"].reshape(1, -1).astype(jnp.float32), head_w, head_b)
    return {
        "normalized_images": normalized,
        "class_logits": slab[:, :NUM_CLASSES],
        "box_deltas": slab[:, NUM_CLASSES:NUM_CLASSES + NUM_BOX],
        "scores": slab[:, SCORE_OFF:SCORE_OFF + NUM_CLASSES],
    }


if __name__ == "__main__":
    key = jax.random.PRNGKey(0)
    k_img, k_roi, k_fc, k_cls, k_bbx = jax.random.split(key, 5)

    num_rois = 64
    images = jax.random.uniform(k_img, (2, 3, 32, 32), dtype=jnp.float32)
    roi_features = 0.1 * jax.random.normal(
        k_roi, (num_rois, ROI_CHANNELS, ROI_POOL, ROI_POOL), dtype=jnp.float32)

    params = {
        "image_mean": jnp.array([0.485, 0.456, 0.406], jnp.float32),
        "image_std": jnp.array([0.229, 0.224, 0.225], jnp.float32),
        "fc_w": 0.01 * jax.random.normal(
            k_fc, (ROI_FEAT, REPRESENTATION_SIZE), jnp.float32),
        "fc_b": jnp.zeros((1, REPRESENTATION_SIZE), jnp.float32),
        "cls_w": 0.01 * jax.random.normal(
            k_cls, (REPRESENTATION_SIZE, NUM_CLASSES), jnp.float32),
        "cls_b": jnp.zeros((NUM_CLASSES,), jnp.float32),
        "bbox_w": 0.01 * jax.random.normal(
            k_bbx, (REPRESENTATION_SIZE, NUM_BOX), jnp.float32),
        "bbox_b": jnp.zeros((NUM_BOX,), jnp.float32),
    }

    out = faster_rcnn_forward(images, roi_features, params)
    out = jax.block_until_ready(out)

    # Exercise the non-128-multiple spatial path (masked remainder block) with
    # a tiny block budget so the grid has several steps.
    odd_images = jax.random.uniform(k_img, (2, 3, 24, 20), dtype=jnp.float32)
    odd_norm = normalize_images(
        odd_images, params["image_mean"], params["image_std"],
        max_block_bytes=4096)
    odd_norm = jax.block_until_ready(odd_norm)

    # Plain-XLA reference with the SAME int8/bf16 weight-compression scheme
    # (intentional precision trade vs. the f32 PyTorch model).
    fcw_q, fcw_scale = _quantize_per_column(params["fc_w"])
    x_bf = roi_features.reshape(num_rois, -1).astype(jnp.bfloat16)
    rep_ref = jnp.maximum(
        jnp.dot(x_bf, fcw_q.astype(jnp.bfloat16),
                preferred_element_type=jnp.float32) * fcw_scale
        + params["fc_b"], 0.0)
    logits_ref = rep_ref @ params["cls_w"] + params["cls_b"]
    deltas_ref = rep_ref @ params["bbox_w"] + params["bbox_b"]
    scores_ref = jax.nn.softmax(logits_ref, axis=-1)
    norm_ref = (images - params["image_mean"].reshape(1, 3, 1, 1)) \
               / params["image_std"].reshape(1, 3, 1, 1)
    odd_norm_ref = (odd_images - params["image_mean"].reshape(1, 3, 1, 1)) \
                   / params["image_std"].reshape(1, 3, 1, 1)

    assert out["class_logits"].shape == (num_rois, NUM_CLASSES)
    assert out["box_deltas"].shape == (num_rois, NUM_BOX)
    assert out["scores"].shape == (num_rois, NUM_CLASSES)
    assert jnp.allclose(out["normalized_images"], norm_ref, atol=1e-5, rtol=1e-5)
    assert jnp.allclose(odd_norm, odd_norm_ref, atol=1e-5, rtol=1e-5)
    assert jnp.allclose(out["class_logits"], logits_ref, atol=2e-3, rtol=1e-2)
    assert jnp.allclose(out["box_deltas"], deltas_ref, atol=2e-3, rtol=1e-2)
    assert jnp.allclose(out["scores"], scores_ref, atol=2e-3, rtol=1e-2)
    print("KERNEL_OK")
</pallas_src>

<mosaic_0001>
module attributes {stable_mosaic.version = 11 : i64} {
  func.func @_normalize_kernel(%arg0: i32, %arg1: memref<6x1024xf32, #tpu.memory_space<vmem>>, %arg2: memref<6x1xf32, #tpu.memory_space<vmem>>, %arg3: memref<6x1xf32, #tpu.memory_space<vmem>>, %arg4: memref<6x1024xf32, #tpu.memory_space<vmem>>) attributes {dimension_semantics = [#tpu.dimension_semantics<parallel>], iteration_bounds = array<i64: 1>, scalar_prefetch = 0 : i64, scratch_operands = 0 : i64, tpu.core_type = #tpu.core_type<tc>, window_params = [{transform_indices = @transform_0, window_bounds = array<i64: 6, 1024>}, {pipeline_mode = #tpu.pipeline_mode<synchronous>, transform_indices = @transform_1, window_bounds = array<i64: 6, 1>}, {pipeline_mode = #tpu.pipeline_mode<synchronous>, transform_indices = @transform_2, window_bounds = array<i64: 6, 1>}, {transform_indices = @transform_3, window_bounds = array<i64: 6, 1024>}]} {
    %c0 = arith.constant 0 : index
    %c0_0 = arith.constant 0 : index
    %0 = vector.load %arg1[%c0, %c0_0] : memref<6x1024xf32, #tpu.memory_space<vmem>>, vector<6x1024xf32>
    %c0_1 = arith.constant 0 : index
    %c0_2 = arith.constant 0 : index
    %1 = vector.load %arg2[%c0_1, %c0_2] : memref<6x1xf32, #tpu.memory_space<vmem>>, vector<6x1xf32>
    %2 = vector.broadcast %1 : vector<6x1xf32> to vector<6x1024xf32>
    %3 = arith.subf %0, %2 : vector<6x1024xf32>
    %c0_3 = arith.constant 0 : index
    %c0_4 = arith.constant 0 : index
    %4 = vector.load %arg3[%c0_3, %c0_4] : memref<6x1xf32, #tpu.memory_space<vmem>>, vector<6x1xf32>
    %5 = vector.broadcast %4 : vector<6x1xf32> to vector<6x1024xf32>
    %6 = arith.mulf %3, %5 : vector<6x1024xf32>
    %c0_5 = arith.constant 0 : index
    %c0_6 = arith.constant 0 : index
    %7 = vector.load %arg4[%c0_5, %c0_6] : memref<6x1024xf32, #tpu.memory_space<vmem>>, vector<6x1024xf32>
    tpu.vector_store %arg4[%c0_5, %c0_6], %6 {strides = array<i32>} : memref<6x1024xf32, #tpu.memory_space<vmem>>, vector<6x1024xf32>,
    return
  }
  func.func @transform_0(%arg0: i32) -> (i32, i32) {
    %c0_i32 = arith.constant 0 : i32
    %c0_i32_0 = arith.constant 0 : i32
    return %c0_i32, %arg0 : i32, i32
  }
  func.func @transform_1(%arg0: i32) -> (i32, i32) {
    %c0_i32 = arith.constant 0 : i32
    %c0_i32_0 = arith.constant 0 : i32
    %c0_i32_1 = arith.constant 0 : i32
    return %c0_i32, %c0_i32_0 : i32, i32
  }
  func.func @transform_2(%arg0: i32) -> (i32, i32) {
    %c0_i32 = arith.constant 0 : i32
    %c0_i32_0 = arith.constant 0 : i32
    %c0_i32_1 = arith.constant 0 : i32
    return %c0_i32, %c0_i32_0 : i32, i32
  }
  func.func @transform_3(%arg0: i32) -> (i32, i32) {
    %c0_i32 = arith.constant 0 : i32
    %c0_i32_0 = arith.constant 0 : i32
    return %c0_i32, %arg0 : i32, i32
  }
}

</mosaic_0001>

<llo_original>
// kernel: tpu_custom_call.1
$region0: #{tpu_custom_call.1}
  #allocation0 [shape = 'u32[]', space=smem, size = 0x4, offset = 0x4, fixed_abs, tag = 'smem constant byte address 0x4 - core index']
  #allocation1 [shape = 'u32[144,128]{1,0:T(1,128)}', space=vmem, size = 0x12000, scoped, tag = 'internal scratch']
  %s0 = inlined_call_operand.hbm [shape: f32[6,1024], index: 0, kind: input, shape index: {}]
  %s1 = inlined_call_operand.vmem [shape: f32[6,1], index: 1, kind: input, shape index: {}]
  %s2 = inlined_call_operand.vmem [shape: f32[6,1], index: 2, kind: input, shape index: {}]
  %s3 = inlined_call_operand.hbm [shape: f32[6,1024], index: 3, kind: output, shape index: {}]
  %s4 = sld [smem:[#allocation0]]
  $region26: #{tpu_custom_call.1} parent=0
    _
  %s6 = ssub.s32 1, %s4
  %s7 = scalar_select 0, %s6, %s4
  $region1: #{tpu_custom_call.1} parent=0
    #allocation2 [shape = 'u8[32768]{0}', space=vmem, size = 0x8000, scoped, tag = 'input window, operand 0, single buffered']
    #allocation3 [shape = 's32[1]{0}', space=sflag, size = 0x4, scoped, tag = 'scoped memory for tpu_custom_call.1']
    #allocation4 [shape = 's32[1]{0}', space=sflag, size = 0x4, scoped, tag = 'scoped memory for tpu_custom_call.1']
    #allocation5 [shape = 'u8[32768]{0}', space=vmem, size = 0x8000, scoped, tag = 'output window, operand 0, single buffered']
    %8 = vsyncpa [#allocation3], 0
    %9 = vsyncpa [#allocation4], 0
    // Predicated region
    $region2: #{tpu_custom_call.1} parent=1 // pred_check
      _
    $region3: #{tpu_custom_call.1} parent=1 // pred_check_branch
      %11 = sbr.rel (0) target = $region5
    $region4: #{tpu_custom_call.1} parent=1 // pred_region
      %s13 = ssub.s32 1024, 1024
      %14 = vsyncadd [#allocation3], %s13
      %s16 = sshll.u32 [#allocation2], 4
      %s17 = int_to_ptr.vmem [resolvable:$true] %s16
      %19 = dma.hbm_to_vmem [thread:$0]  %s0, 1024, %s17, [#allocation3]
    $region5: #{tpu_custom_call.1} parent=1 // pred_fallthru
      _
    // Predicated region
    $region6: #{tpu_custom_call.1} parent=1 // pred_check
      _
    $region7: #{tpu_custom_call.1} parent=1 // pred_check_branch
      %21 = sbr.rel (0) target = $region9
    $region8: #{tpu_custom_call.1} parent=1 // pred_region
      _
    $region9: #{tpu_custom_call.1} parent=1 // pred_fallthru
      _
    // Predicated region
    $region10: #{tpu_custom_call.1} parent=1 // pred_check
      _
    $region11: #{tpu_custom_call.1} parent=1 // pred_check_branch
      %23 = sbr.rel (0) target = $region13
    $region12: #{tpu_custom_call.1} parent=1 // pred_region
      _
    $region13: #{tpu_custom_call.1} parent=1 // pred_fallthru
      _
    // Predicated region
    $region14: #{tpu_custom_call.1} parent=1 // pred_check
      _
    $region15: #{tpu_custom_call.1} parent=1 // pred_check_branch
      %25 = sbr.rel (0) target = $region17
    $region16: #{tpu_custom_call.1} parent=1 // pred_region
      %26 = dma.done [#allocation3], 1024
    $region17: #{tpu_custom_call.1} parent=1 // pred_fallthru
      _
    %v27 = vld [vmem:[#allocation2] sm:$0x3f]
    %v28 = vld [vmem:[#allocation2 + $0x8] sm:$0x3f]
    %v29 = vld [vmem:[#allocation2 + $0x10] sm:$0x3f]
    %v30 = vld [vmem:[#allocation2 + $0x18] sm:$0x3f]
    %v31 = vld [vmem:[#allocation2 + $0x20] sm:$0x3f]
    %v32 = vld [vmem:[#allocation2 + $0x28] sm:$0x3f]
    %v33 = vld [vmem:[#allocation2 + $0x30] sm:$0x3f]
    %v34 = vld [vmem:[#allocation2 + $0x38] sm:$0x3f]
    %v35 = vld [vmem:[%s1] sm:$0x3f]
    %37 = vset.pattern.permute.xlu0 0
    %38 = vperm.xlu0 %37, %v35
    %v39 = vpop.permute.xlu0 %38
    %v41 = vsub.f32 %v27, %v39
    %v42 = vsub.f32 %v28, %v39
    %v43 = vsub.f32 %v29, %v39
    %v44 = vsub.f32 %v30, %v39
    %v45 = vsub.f32 %v31, %v39
    %v46 = vsub.f32 %v32, %v39
    %v47 = vsub.f32 %v33, %v39
    %v48 = vsub.f32 %v34, %v39
    %v49 = vld [vmem:[%s2] sm:$0x3f]
    %51 = vset.pattern.permute.xlu0 0
    %52 = vperm.xlu0 %51, %v49
    %v53 = vpop.permute.xlu0 %52
    %v55 = vmul.f32 %v41, %v53
    %v56 = vmul.f32 %v42, %v53
    %v57 = vmul.f32 %v43, %v53
    %v58 = vmul.f32 %v44, %v53
    %v59 = vmul.f32 %v45, %v53
    %v60 = vmul.f32 %v46, %v53
    %v61 = vmul.f32 %v47, %v53
    %v62 = vmul.f32 %v48, %v53
    %63 = vst [vmem:[#allocation5] sm:$0x3f] %v55
    %64 = vst [vmem:[#allocation5 + $0x8] sm:$0x3f] %v56
    %65 = vst [vmem:[#allocation5 + $0x10] sm:$0x3f] %v57
    %66 = vst [vmem:[#allocation5 + $0x18] sm:$0x3f] %v58
    %67 = vst [vmem:[#allocation5 + $0x20] sm:$0x3f] %v59
    %68 = vst [vmem:[#allocation5 + $0x28] sm:$0x3f] %v60
    %69 = vst [vmem:[#allocation5 + $0x30] sm:$0x3f] %v61
    %70 = vst [vmem:[#allocation5 + $0x38] sm:$0x3f] %v62
    // Predicated region
    $region18: #{tpu_custom_call.1} parent=1 // pred_check
      _
    $region19: #{tpu_custom_call.1} parent=1 // pred_check_branch
      %72 = sbr.rel (0) target = $region21
    $region20: #{tpu_custom_call.1} parent=1 // pred_region
      %s74 = ssub.s32 1024, 1024
      %75 = vsyncadd [#allocation4], %s74
      %s77 = sshll.u32 [#allocation5], 4
      %s78 = int_to_ptr.vmem [resolvable:$true] %s77
      %80 = dma.vmem_to_hbm [thread:$0]  %s78, 1024, %s3, [#allocation4]
    $region21: #{tpu_custom_call.1} parent=1 // pred_fallthru
      _
    // Predicated region
    $region22: #{tpu_custom_call.1} parent=1 // pred_check
      _
    $region23: #{tpu_custom_call.1} parent=1 // pred_check_branch
      %82 = sbr.rel (0) target = $region25
    $region24: #{tpu_custom_call.1} parent=1 // pred_region
      %83 = dma.done [#allocation4], 1024
    $region25: #{tpu_custom_call.1} parent=1 // pred_fallthru
      _
    %84 = vsyncpa [#allocation3], 1
    %85 = vsyncpa [#allocation4], 1

</llo_original>
